<compile_context>
chip_gen: v6e
topology: v6e:2x2x1
jax: 0.10.0
libtpu: 0.0.40
codegen_flags: <defaults>
</compile_context>

<pallas_src>
import functools

import jax
import jax.numpy as jnp
from jax.experimental import pallas as pl
from jax.experimental.pallas import tpu as pltpu

LANE = 128      # vreg lane width
SUBLANE = 8     # vreg sublane count (f32)


def _round_up(n, m):
    return ((n + m - 1) // m) * m


# ----------------------------------------------------------------------------
# Kernels
# ----------------------------------------------------------------------------
def qnet_kernel(x_ref, w1_ref, b1_ref, w2_ref, b2_ref, w3_ref, b3_ref, out_ref):
    """Single network, one batch tile.  MXU accumulates in f32; bias-add + ReLU
    epilogues are f32 (v5e-friendly).  x and W1 are always f32; W2/W3 may be
    bf16 (cast of h1/h2 feeds the bf16 MXU)."""
    cdt = w2_ref.dtype
    h1 = jnp.dot(x_ref[...], w1_ref[...], preferred_element_type=jnp.float32)
    h1 = jnp.maximum(h1 + b1_ref[...], 0.0)
    h2 = jnp.dot(h1.astype(cdt), w2_ref[...], preferred_element_type=jnp.float32)
    h2 = jnp.maximum(h2 + b2_ref[...], 0.0)
    q = jnp.dot(h2.astype(cdt), w3_ref[...], preferred_element_type=jnp.float32)
    out_ref[...] = (q + b3_ref[...]).astype(out_ref.dtype)


def qnet_avg_heads_kernel(x_ref, w1_ref, b1_ref, w2_ref, b2_ref, w3_ref, b3_ref,
                          out_ref, *, inv_k):
    """K stacked networks (AveragedDQN heads), average fused into the kernel.
    Grid = (batch_tiles, K) with the head axis innermost ('arbitrary'); the
    output block is resident across heads and is only written back once per
    batch tile."""
    h = pl.program_id(1)
    cdt = w2_ref.dtype

    h1 = jnp.dot(x_ref[...], w1_ref[0], preferred_element_type=jnp.float32)
    h1 = jnp.maximum(h1 + b1_ref[0], 0.0)
    h2 = jnp.dot(h1.astype(cdt), w2_ref[0], preferred_element_type=jnp.float32)
    h2 = jnp.maximum(h2 + b2_ref[0], 0.0)
    q = jnp.dot(h2.astype(cdt), w3_ref[0], preferred_element_type=jnp.float32)
    q = q + b3_ref[0]

    @pl.when(h == 0)
    def _():
        out_ref[...] = jnp.zeros_like(out_ref)

    out_ref[...] += q.astype(out_ref.dtype)

    @pl.when(h == pl.num_programs(1) - 1)
    def _():
        out_ref[...] *= jnp.float32(inv_k)


def qnet_greedy_kernel(x_ref, w1_ref, b1_ref, w2_ref, b2_ref, w3_ref, b3_ref,
                       act_ref, *, action_size):
    """Single network + fused argmax over the real actions; emits (tile, 1)
    int32 greedy actions (no Q writeback at all)."""
    cdt = w2_ref.dtype
    h1 = jnp.dot(x_ref[...], w1_ref[...], preferred_element_type=jnp.float32)
    h1 = jnp.maximum(h1 + b1_ref[...], 0.0)
    h2 = jnp.dot(h1.astype(cdt), w2_ref[...], preferred_element_type=jnp.float32)
    h2 = jnp.maximum(h2 + b2_ref[...], 0.0)
    q = jnp.dot(h2.astype(cdt), w3_ref[...], preferred_element_type=jnp.float32)
    q = q + b3_ref[...]

    lane = jax.lax.broadcasted_iota(jnp.int32, q.shape, 1)
    qv = jnp.where(lane < action_size, q, -jnp.inf)           # mask pad lanes
    qmax = jnp.max(qv, axis=-1, keepdims=True)
    best = jnp.min(jnp.where(qv >= qmax, lane, jnp.int32(q.shape[-1])),
                   axis=-1, keepdims=True)                    # first maximal index
    act_ref[...] = best.astype(act_ref.dtype)


# ----------------------------------------------------------------------------
# Parameter preparation (pad + cast once, outside the hot path)
# ----------------------------------------------------------------------------
def init_params(key, state_size, action_size, fc1_units=64, fc2_units=64):
    """Mirror nn.Linear's U(-1/sqrt(fan_in), 1/sqrt(fan_in)).
    Weights stored as (in_features, out_features) == W.T relative to PyTorch."""
    def linear(k, fan_in, fan_out):
        kw, kb = jax.random.split(k)
        bound = 1.0 / jnp.sqrt(float(fan_in))
        w = jax.random.uniform(kw, (fan_in, fan_out), jnp.float32, -bound, bound)
        b = jax.random.uniform(kb, (1, fan_out), jnp.float32, -bound, bound)
        return w, b

    k1, k2, k3 = jax.random.split(key, 3)
    w1, b1 = linear(k1, state_size, fc1_units)
    w2, b2 = linear(k2, fc1_units, fc2_units)
    w3, b3 = linear(k3, fc2_units, action_size)
    return dict(w1=w1, b1=b1, w2=w2, b2=b2, w3=w3, b3=b3)


def prepare_params(params, compute_dtype=jnp.float32):
    """Zero-pad hidden widths to 128 lanes and the action dim to a multiple of
    8 (zero pads keep the math exact).  W1 and all biases stay f32; only W2/W3
    are cast to the MXU compute dtype."""
    w1, b1, w2, b2, w3, b3 = (params[k] for k in ("w1", "b1", "w2", "b2", "w3", "b3"))
    s, h1 = w1.shape
    h2 = w2.shape[1]
    a = w3.shape[1]
    h1p = _round_up(h1, LANE)
    h2p = _round_up(h2, LANE)
    ap = _round_up(a, SUBLANE)

    def pad2(x, rows, cols):
        return jnp.pad(x, ((0, rows - x.shape[0]), (0, cols - x.shape[1])))

    prepped = dict(
        w1=pad2(w1, s, h1p).astype(jnp.float32),
        b1=pad2(b1, 1, h1p).astype(jnp.float32),
        w2=pad2(w2, h1p, h2p).astype(compute_dtype),
        b2=pad2(b2, 1, h2p).astype(jnp.float32),
        w3=pad2(w3, h2p, ap).astype(compute_dtype),
        b3=pad2(b3, 1, ap).astype(jnp.float32),
    )
    meta = dict(state_size=s, action_size=a, compute_dtype=compute_dtype)
    return prepped, meta


def stack_prepared_params(prepared_list):
    """Stack K prepared parameter sets along a leading head axis."""
    prepped_list = [p for p, _ in prepared_list]
    metas = [m for _, m in prepared_list]
    meta0 = metas[0]
    for m in metas[1:]:
        assert (m["compute_dtype"] == meta0["compute_dtype"]
                and m["state_size"] == meta0["state_size"]
                and m["action_size"] == meta0["action_size"]), \
            "all heads must share compute dtype and sizes"
    for p in prepped_list[1:]:
        for k in prepped_list[0]:
            assert p[k].shape == prepped_list[0][k].shape
            assert p[k].dtype == prepped_list[0][k].dtype
    stacked = {k: jnp.stack([p[k] for p in prepped_list]) for k in prepped_list[0]}
    return stacked, meta0


def _choose_tile(batch, tile_b):
    """Single grid step for small batches; tiles of tile_b (>=2 steps, feeding
    v7x's two TensorCores via the 'parallel' axis) for large ones."""
    b8 = _round_up(max(batch, 1), SUBLANE)
    return min(tile_b, b8)


def _single_net_specs(tile, sp, h1p, h2p, ap):
    # x / out tiled over batch; weights & biases stay VMEM-resident (index 0,0).
    return [
        pl.BlockSpec((tile, sp), lambda i: (i, 0)),
        pl.BlockSpec((sp, h1p), lambda i: (0, 0)),
        pl.BlockSpec((1, h1p), lambda i: (0, 0)),
        pl.BlockSpec((h1p, h2p), lambda i: (0, 0)),
        pl.BlockSpec((1, h2p), lambda i: (0, 0)),
        pl.BlockSpec((h2p, ap), lambda i: (0, 0)),
        pl.BlockSpec((1, ap), lambda i: (0, 0)),
    ]


# ----------------------------------------------------------------------------
# Forward wrappers
# ----------------------------------------------------------------------------
def qnetwork_forward(state, prepared, *, tile_b=2048):
    """state: (B, state_size) f32; prepared: output of prepare_params()."""
    prepped, meta = prepared
    w1, b1, w2, b2, w3, b3 = (prepped[k] for k in ("w1", "b1", "w2", "b2", "w3", "b3"))
    sp, h1p = w1.shape
    h2p = w2.shape[1]
    ap = w3.shape[1]
    b = state.shape[0]
    a = meta["action_size"]
    assert state.shape[1] == sp
    if state.dtype != jnp.float32:
        state = state.astype(jnp.float32)
    tile = _choose_tile(b, tile_b)

    out = pl.pallas_call(
        qnet_kernel,
        out_shape=jax.ShapeDtypeStruct((b, ap), jnp.float32),
        grid_spec=pltpu.PrefetchScalarGridSpec(
            num_scalar_prefetch=0,
            grid=(pl.cdiv(b, tile),),
            in_specs=_single_net_specs(tile, sp, h1p, h2p, ap),
            out_specs=pl.BlockSpec((tile, ap), lambda i: (i, 0)),
        ),
        compiler_params=pltpu.CompilerParams(
            dimension_semantics=("parallel",),
        ),
    )(state, w1, b1, w2, b2, w3, b3)
    return out[:, :a]


def qnetwork_greedy_action(state, prepared, *, tile_b=2048):
    """Greedy action selection fused into the kernel; returns (B,) int32."""
    prepped, meta = prepared
    w1, b1, w2, b2, w3, b3 = (prepped[k] for k in ("w1", "b1", "w2", "b2", "w3", "b3"))
    sp, h1p = w1.shape
    h2p = w2.shape[1]
    ap = w3.shape[1]
    b = state.shape[0]
    a = meta["action_size"]
    assert state.shape[1] == sp
    if state.dtype != jnp.float32:
        state = state.astype(jnp.float32)
    tile = _choose_tile(b, tile_b)

    out = pl.pallas_call(
        functools.partial(qnet_greedy_kernel, action_size=a),
        out_shape=jax.ShapeDtypeStruct((b, 1), jnp.int32),
        grid_spec=pltpu.PrefetchScalarGridSpec(
            num_scalar_prefetch=0,
            grid=(pl.cdiv(b, tile),),
            in_specs=_single_net_specs(tile, sp, h1p, h2p, ap),
            out_specs=pl.BlockSpec((tile, 1), lambda i: (i, 0)),
        ),
        compiler_params=pltpu.CompilerParams(
            dimension_semantics=("parallel",),
        ),
    )(state, w1, b1, w2, b2, w3, b3)
    return out[:, 0]


def qnetwork_forward_avg_heads(state, stacked_prepared, *, tile_b=2048):
    """Averaged-DQN target: evaluate K heads and their mean in one pallas_call.
    Returns (B, action_size)."""
    prepped, meta = stacked_prepared
    w1, b1, w2, b2, w3, b3 = (prepped[k] for k in ("w1", "b1", "w2", "b2", "w3", "b3"))
    k_heads, sp, h1p = w1.shape
    h2p = w2.shape[2]
    ap = w3.shape[2]
    b = state.shape[0]
    a = meta["action_size"]
    assert state.shape[1] == sp
    if state.dtype != jnp.float32:
        state = state.astype(jnp.float32)
    tile = _choose_tile(b, tile_b)

    out = pl.pallas_call(
        functools.partial(qnet_avg_heads_kernel, inv_k=1.0 / k_heads),
        out_shape=jax.ShapeDtypeStruct((b, ap), jnp.float32),
        grid_spec=pltpu.PrefetchScalarGridSpec(
            num_scalar_prefetch=0,
            # head axis innermost: x block and output block stay resident across
            # heads; weights swap per head (tiny: ~66-132 KiB/head).
            grid=(pl.cdiv(b, tile), k_heads),
            in_specs=[
                pl.BlockSpec((tile, sp), lambda i, h: (i, 0)),
                pl.BlockSpec((1, sp, h1p), lambda i, h: (h, 0, 0)),
                pl.BlockSpec((1, 1, h1p), lambda i, h: (h, 0, 0)),
                pl.BlockSpec((1, h1p, h2p), lambda i, h: (h, 0, 0)),
                pl.BlockSpec((1, 1, h2p), lambda i, h: (h, 0, 0)),
                pl.BlockSpec((1, h2p, ap), lambda i, h: (h, 0, 0)),
                pl.BlockSpec((1, 1, ap), lambda i, h: (h, 0, 0)),
            ],
            out_specs=pl.BlockSpec((tile, ap), lambda i, h: (i, 0)),
        ),
        compiler_params=pltpu.CompilerParams(
            dimension_semantics=("parallel", "arbitrary"),
        ),
    )(state, w1, b1, w2, b2, w3, b3)
    return out[:, :a]


def qnetwork_forward_ref(state, params):
    """Pure-JAX reference (unpadded, f32)."""
    h1 = jnp.maximum(state @ params["w1"] + params["b1"], 0.0)
    h2 = jnp.maximum(h1 @ params["w2"] + params["b2"], 0.0)
    return h2 @ params["w3"] + params["b3"]


if __name__ == "__main__":
    # LunarLander-v2: 8-dim state, 4 discrete actions.
    STATE_SIZE, ACTION_SIZE = 8, 4
    BATCH = 8

    key = jax.random.PRNGKey(0)
    kp, kx, kxl = jax.random.split(key, 3)
    params = init_params(kp, STATE_SIZE, ACTION_SIZE, fc1_units=64, fc2_units=64)
    state = jax.random.normal(kx, (BATCH, STATE_SIZE), jnp.float32)
    q_ref = qnetwork_forward_ref(state, params)

    # 1) f32 path, tiny batch (single grid step).
    prep32 = prepare_params(params, jnp.float32)
    q = jax.block_until_ready(qnetwork_forward(state, prep32))
    assert q.shape == (BATCH, ACTION_SIZE)
    assert jnp.allclose(q, q_ref, atol=1e-5, rtol=1e-5)

    # 2) bf16 W2/W3 path (x & W1 stay f32, f32 MXU accumulate): loose check.
    prep16 = prepare_params(params, jnp.bfloat16)
    q16 = jax.block_until_ready(qnetwork_forward(state, prep16))
    assert q16.shape == (BATCH, ACTION_SIZE)
    assert jnp.max(jnp.abs(q16 - q_ref)) < 5e-2

    # 3) f32 path, B=600: one 608-row block with a masked boundary, then a
    #    forced multi-step batch grid (tile_b=256 -> 3 steps, last partial).
    state_l = jax.random.normal(kxl, (600, STATE_SIZE), jnp.float32)
    q_lref = qnetwork_forward_ref(state_l, params)
    q_l = jax.block_until_ready(qnetwork_forward(state_l, prep32))
    assert q_l.shape == (600, ACTION_SIZE)
    assert jnp.allclose(q_l, q_lref, atol=1e-5, rtol=1e-5)
    q_l2 = jax.block_until_ready(qnetwork_forward(state_l, prep32, tile_b=256))
    assert jnp.allclose(q_l2, q_lref, atol=1e-5, rtol=1e-5)

    # 4) AveragedDQN: K heads + mean fused into a single pallas_call.
    K = 3
    head_keys = jax.random.split(jax.random.PRNGKey(1), K)
    head_params = [init_params(k, STATE_SIZE, ACTION_SIZE) for k in head_keys]
    stacked = stack_prepared_params([prepare_params(p, jnp.float32) for p in head_params])
    q_avg = jax.block_until_ready(qnetwork_forward_avg_heads(state_l, stacked))
    q_avg_ref = jnp.mean(
        jnp.stack([qnetwork_forward_ref(state_l, p) for p in head_params]), axis=0)
    assert q_avg.shape == (600, ACTION_SIZE)
    assert jnp.allclose(q_avg, q_avg_ref, atol=1e-5, rtol=1e-5)

    # 5) Fused greedy action selection.
    act = jax.block_until_ready(qnetwork_greedy_action(state_l, prep32))
    assert act.shape == (600,)
    assert jnp.array_equal(act, jnp.argmax(q_lref, axis=-1).astype(jnp.int32))

    print("KERNEL_OK")
</pallas_src>

<mosaic_0001>
module attributes {stable_mosaic.version = 11 : i64} {
  func.func @qnet_kernel(%arg0: i32, %arg1: memref<8x8xf32, #tpu.memory_space<vmem>>, %arg2: memref<8x128xf32, #tpu.memory_space<vmem>>, %arg3: memref<1x128xf32, #tpu.memory_space<vmem>>, %arg4: memref<128x128xf32, #tpu.memory_space<vmem>>, %arg5: memref<1x128xf32, #tpu.memory_space<vmem>>, %arg6: memref<128x8xf32, #tpu.memory_space<vmem>>, %arg7: memref<1x8xf32, #tpu.memory_space<vmem>>, %arg8: memref<8x8xf32, #tpu.memory_space<vmem>>) attributes {dimension_semantics = [#tpu.dimension_semantics<parallel>], iteration_bounds = array<i64: 1>, scalar_prefetch = 0 : i64, scratch_operands = 0 : i64, tpu.core_type = #tpu.core_type<tc>, window_params = [{transform_indices = @transform_0, window_bounds = array<i64: 8, 8>}, {pipeline_mode = #tpu.pipeline_mode<synchronous>, transform_indices = @transform_1, window_bounds = array<i64: 8, 128>}, {pipeline_mode = #tpu.pipeline_mode<synchronous>, transform_indices = @transform_2, window_bounds = array<i64: 1, 128>}, {pipeline_mode = #tpu.pipeline_mode<synchronous>, transform_indices = @transform_3, window_bounds = array<i64: 128, 128>}, {pipeline_mode = #tpu.pipeline_mode<synchronous>, transform_indices = @transform_4, window_bounds = array<i64: 1, 128>}, {pipeline_mode = #tpu.pipeline_mode<synchronous>, transform_indices = @transform_5, window_bounds = array<i64: 128, 8>}, {pipeline_mode = #tpu.pipeline_mode<synchronous>, transform_indices = @transform_6, window_bounds = array<i64: 1, 8>}, {transform_indices = @transform_7, window_bounds = array<i64: 8, 8>}]} {
    %c0 = arith.constant 0 : index
    %c0_0 = arith.constant 0 : index
    %0 = vector.load %arg1[%c0, %c0_0] : memref<8x8xf32, #tpu.memory_space<vmem>>, vector<8x8xf32>
    %c0_1 = arith.constant 0 : index
    %c0_2 = arith.constant 0 : index
    %1 = vector.load %arg2[%c0_1, %c0_2] : memref<8x128xf32, #tpu.memory_space<vmem>>, vector<8x128xf32>
    %cst = arith.constant dense<0.000000e+00> : vector<8x128xf32>
    %2 = tpu.matmul %0, %1, %cst {dimension_numbers = #tpu.dot_dimension_numbers<[1], [0], [0], [1], [0, 0, 1, 1], [], []>} : vector<8x8xf32>, vector<8x128xf32>, vector<8x128xf32> -> vector<8x128xf32>
    %c0_3 = arith.constant 0 : index
    %c0_4 = arith.constant 0 : index
    %3 = vector.load %arg3[%c0_3, %c0_4] : memref<1x128xf32, #tpu.memory_space<vmem>>, vector<1x128xf32>
    %4 = vector.broadcast %3 : vector<1x128xf32> to vector<8x128xf32>
    %5 = arith.addf %2, %4 : vector<8x128xf32>
    %cst_5 = arith.constant 0.000000e+00 : f32
    %6 = vector.broadcast %cst_5 : f32 to vector<8x128xf32>
    %7 = arith.maximumf %5, %6 : vector<8x128xf32>
    %c0_6 = arith.constant 0 : index
    %c0_7 = arith.constant 0 : index
    %8 = vector.load %arg4[%c0_6, %c0_7] : memref<128x128xf32, #tpu.memory_space<vmem>>, vector<128x128xf32>
    %cst_8 = arith.constant dense<0.000000e+00> : vector<8x128xf32>
    %9 = tpu.matmul %7, %8, %cst_8 {dimension_numbers = #tpu.dot_dimension_numbers<[1], [0], [0], [1], [0, 0, 1, 1], [], []>} : vector<8x128xf32>, vector<128x128xf32>, vector<8x128xf32> -> vector<8x128xf32>
    %c0_9 = arith.constant 0 : index
    %c0_10 = arith.constant 0 : index
    %10 = vector.load %arg5[%c0_9, %c0_10] : memref<1x128xf32, #tpu.memory_space<vmem>>, vector<1x128xf32>
    %11 = vector.broadcast %10 : vector<1x128xf32> to vector<8x128xf32>
    %12 = arith.addf %9, %11 : vector<8x128xf32>
    %cst_11 = arith.constant 0.000000e+00 : f32
    %13 = vector.broadcast %cst_11 : f32 to vector<8x128xf32>
    %14 = arith.maximumf %12, %13 : vector<8x128xf32>
    %c0_12 = arith.constant 0 : index
    %c0_13 = arith.constant 0 : index
    %15 = vector.load %arg6[%c0_12, %c0_13] : memref<128x8xf32, #tpu.memory_space<vmem>>, vector<128x8xf32>
    %cst_14 = arith.constant dense<0.000000e+00> : vector<8x8xf32>
    %16 = tpu.matmul %14, %15, %cst_14 {dimension_numbers = #tpu.dot_dimension_numbers<[1], [0], [0], [1], [0, 0, 1, 1], [], []>} : vector<8x128xf32>, vector<128x8xf32>, vector<8x8xf32> -> vector<8x8xf32>
    %c0_15 = arith.constant 0 : index
    %c0_16 = arith.constant 0 : index
    %17 = vector.load %arg7[%c0_15, %c0_16] : memref<1x8xf32, #tpu.memory_space<vmem>>, vector<1x8xf32>
    %18 = vector.broadcast %17 : vector<1x8xf32> to vector<8x8xf32>
    %19 = arith.addf %16, %18 : vector<8x8xf32>
    %c0_17 = arith.constant 0 : index
    %c0_18 = arith.constant 0 : index
    %20 = vector.load %arg8[%c0_17, %c0_18] : memref<8x8xf32, #tpu.memory_space<vmem>>, vector<8x8xf32>
    tpu.vector_store %arg8[%c0_17, %c0_18], %19 {strides = array<i32>} : memref<8x8xf32, #tpu.memory_space<vmem>>, vector<8x8xf32>,
    return
  }
  func.func @transform_0(%arg0: i32) -> (i32, i32) {
    %c0_i32 = arith.constant 0 : i32
    %c0_i32_0 = arith.constant 0 : i32
    return %arg0, %c0_i32 : i32, i32
  }
  func.func @transform_1(%arg0: i32) -> (i32, i32) {
    %c0_i32 = arith.constant 0 : i32
    %c0_i32_0 = arith.constant 0 : i32
    %c0_i32_1 = arith.constant 0 : i32
    return %c0_i32, %c0_i32_0 : i32, i32
  }
  func.func @transform_2(%arg0: i32) -> (i32, i32) {
    %c0_i32 = arith.constant 0 : i32
    %c0_i32_0 = arith.constant 0 : i32
    %c0_i32_1 = arith.constant 0 : i32
    return %c0_i32, %c0_i32_0 : i32, i32
  }
  func.func @transform_3(%arg0: i32) -> (i32, i32) {
    %c0_i32 = arith.constant 0 : i32
    %c0_i32_0 = arith.constant 0 : i32
    %c0_i32_1 = arith.constant 0 : i32
    return %c0_i32, %c0_i32_0 : i32, i32
  }
  func.func @transform_4(%arg0: i32) -> (i32, i32) {
    %c0_i32 = arith.constant 0 : i32
    %c0_i32_0 = arith.constant 0 : i32
    %c0_i32_1 = arith.constant 0 : i32
    return %c0_i32, %c0_i32_0 : i32, i32
  }
  func.func @transform_5(%arg0: i32) -> (i32, i32) {
    %c0_i32 = arith.constant 0 : i32
    %c0_i32_0 = arith.constant 0 : i32
    %c0_i32_1 = arith.constant 0 : i32
    return %c0_i32, %c0_i32_0 : i32, i32
  }
  func.func @transform_6(%arg0: i32) -> (i32, i32) {
    %c0_i32 = arith.constant 0 : i32
    %c0_i32_0 = arith.constant 0 : i32
    %c0_i32_1 = arith.constant 0 : i32
    return %c0_i32, %c0_i32_0 : i32, i32
  }
  func.func @transform_7(%arg0: i32) -> (i32, i32) {
    %c0_i32 = arith.constant 0 : i32
    %c0_i32_0 = arith.constant 0 : i32
    return %arg0, %c0_i32 : i32, i32
  }
}

</mosaic_0001>

<llo_original>
// kernel: tpu_custom_call.1
$region0: #{tpu_custom_call.1}
  #allocation0 [shape = 'u32[]', space=smem, size = 0x4, offset = 0x4, fixed_abs, tag = 'smem constant byte address 0x4 - core index']
  #allocation1 [shape = 'u32[144,128]{1,0:T(1,128)}', space=vmem, size = 0x12000, scoped, tag = 'internal scratch']
  %s0 = inlined_call_operand.vmem [shape: f32[8,8], index: 0, kind: input, shape index: {}]
  %s1 = inlined_call_operand.hbm [shape: f32[8,128], index: 1, kind: input, shape index: {}]
  %s2 = inlined_call_operand.vmem [shape: f32[1,128], index: 2, kind: input, shape index: {}]
  %s3 = inlined_call_operand.vmem [shape: f32[128,128], index: 3, kind: input, shape index: {}]
  %s4 = inlined_call_operand.hbm [shape: f32[1,128], index: 4, kind: input, shape index: {}]
  %s5 = inlined_call_operand.vmem [shape: f32[128,8], index: 5, kind: input, shape index: {}]
  %s6 = inlined_call_operand.vmem [shape: f32[1,8], index: 6, kind: input, shape index: {}]
  %s7 = inlined_call_operand.hbm [shape: f32[8,8], index: 7, kind: output, shape index: {}]
  %s8 = sld [smem:[#allocation0]]
  $region46: #{tpu_custom_call.1} parent=0
    _
  %s10 = ssub.s32 1, %s8
  %s11 = scalar_select 0, %s10, %s8
  $region1: #{tpu_custom_call.1} parent=0
    #allocation2 [shape = 'u8[4096]{0}', space=vmem, size = 0x1000, scoped, tag = 'input window, operand 1, single buffered']
    #allocation3 [shape = 's32[1]{0}', space=sflag, size = 0x4, scoped, tag = 'scoped memory for tpu_custom_call.1']
    #allocation4 [shape = 's32[1]{0}', space=sflag, size = 0x4, scoped, tag = 'scoped memory for tpu_custom_call.1']
    #allocation5 [shape = 'u8[512]{0}', space=vmem, size = 0x400, scoped, tag = 'input window, operand 4, single buffered']
    #allocation6 [shape = 's32[1]{0}', space=sflag, size = 0x4, scoped, tag = 'scoped memory for tpu_custom_call.1']
    #allocation7 [shape = 'u8[4096]{0}', space=vmem, size = 0x1000, scoped, tag = 'output window, operand 0, single buffered']
    %12 = vsyncpa [#allocation3], 0
    %13 = vsyncpa [#allocation6], 0
    %14 = vsyncpa [#allocation4], 0
    // Predicated region
    $region2: #{tpu_custom_call.1} parent=1 // pred_check
      _
    $region3: #{tpu_custom_call.1} parent=1 // pred_check_branch
      %16 = sbr.rel (0) target = $region5
    $region4: #{tpu_custom_call.1} parent=1 // pred_region
      _
    $region5: #{tpu_custom_call.1} parent=1 // pred_fallthru
      _
    // Predicated region
    $region6: #{tpu_custom_call.1} parent=1 // pred_check
      _
    $region7: #{tpu_custom_call.1} parent=1 // pred_check_branch
      %18 = sbr.rel (0) target = $region9
    $region8: #{tpu_custom_call.1} parent=1 // pred_region
      %s20 = ssub.s32 128, 128
      %21 = vsyncadd [#allocation3], %s20
      %s23 = sshll.u32 [#allocation2], 4
      %s24 = int_to_ptr.vmem [resolvable:$true] %s23
      %26 = dma.hbm_to_vmem [thread:$0]  %s1, 128, %s24, [#allocation3]
    $region9: #{tpu_custom_call.1} parent=1 // pred_fallthru
      _
    // Predicated region
    $region10: #{tpu_custom_call.1} parent=1 // pred_check
      _
    $region11: #{tpu_custom_call.1} parent=1 // pred_check_branch
      %28 = sbr.rel (0) target = $region13
    $region12: #{tpu_custom_call.1} parent=1 // pred_region
      _
    $region13: #{tpu_custom_call.1} parent=1 // pred_fallthru
      _
    // Predicated region
    $region14: #{tpu_custom_call.1} parent=1 // pred_check
      _
    $region15: #{tpu_custom_call.1} parent=1 // pred_check_branch
      %30 = sbr.rel (0) target = $region17
    $region16: #{tpu_custom_call.1} parent=1 // pred_region
      _
    $region17: #{tpu_custom_call.1} parent=1 // pred_fallthru
      _
    // Predicated region
    $region18: #{tpu_custom_call.1} parent=1 // pred_check
      _
    $region19: #{tpu_custom_call.1} parent=1 // pred_check_branch
      %32 = sbr.rel (0) target = $region21
    $region20: #{tpu_custom_call.1} parent=1 // pred_region
      %s34 = ssub.s32 16, 16
      %35 = vsyncadd [#allocation6], %s34
      %s37 = sshll.u32 [#allocation5], 4
      %s38 = int_to_ptr.vmem [resolvable:$true] %s37
      %40 = dma.hbm_to_vmem [thread:$0]  %s4, 16, %s38, [#allocation6]
    $region21: #{tpu_custom_call.1} parent=1 // pred_fallthru
      _
    // Predicated region
    $region22: #{tpu_custom_call.1} parent=1 // pred_check
      _
    $region23: #{tpu_custom_call.1} parent=1 // pred_check_branch
      %42 = sbr.rel (0) target = $region25
    $region24: #{tpu_custom_call.1} parent=1 // pred_region
      _
    $region25: #{tpu_custom_call.1} parent=1 // pred_fallthru
      _
    // Predicated region
    $region26: #{tpu_custom_call.1} parent=1 // pred_check
      _
    $region27: #{tpu_custom_call.1} parent=1 // pred_check_branch
      %44 = sbr.rel (0) target = $region29
    $region28: #{tpu_custom_call.1} parent=1 // pred_region
      _
    $region29: #{tpu_custom_call.1} parent=1 // pred_fallthru
      _
    // Predicated region
    $region30: #{tpu_custom_call.1} parent=1 // pred_check
      _
    $region31: #{tpu_custom_call.1} parent=1 // pred_check_branch
      %46 = sbr.rel (0) target = $region33
    $region32: #{tpu_custom_call.1} parent=1 // pred_region
      %47 = dma.done [#allocation3], 128
    $region33: #{tpu_custom_call.1} parent=1 // pred_fallthru
      _
    // Predicated region
    $region34: #{tpu_custom_call.1} parent=1 // pred_check
      _
    $region35: #{tpu_custom_call.1} parent=1 // pred_check_branch
      %49 = sbr.rel (0) target = $region37
    $region36: #{tpu_custom_call.1} parent=1 // pred_region
      %50 = dma.done [#allocation6], 16
    $region37: #{tpu_custom_call.1} parent=1 // pred_fallthru
      _
    %v51 = vld [vmem:[%s0] sm:$0xff]
    %v52 = vld [vmem:[#allocation2] sm:$0xff]
    %v53 = vld [vmem:[%s2] sm:$0x1]
    %v55 = vlaneseq
    %v56 = vshrl.u32 %v55, 7
    %v57 = vsub.s32 0, %v56
    %v58 = vrot.slane %v53, %v57
    %vm60 = vcmask 64512
    %v62 = vsel %vm60, %v51, 0
    %64 = vmatprep.subr.mxu0 0.0
    %65 = vmatpush1.msra.mxu0 0.0
    %66 = vmatprep.subr.mxu0 0.0
    %67 = vmatpush1.msra.mxu0 0.0
    %68 = vmatprep.subr.mxu0 0.0
    %69 = vmatpush1.msra.mxu0 0.0
    %70 = vmatprep.subr.mxu0 0.0
    %71 = vmatpush1.msra.mxu0 0.0
    %72 = vmatprep.subr.mxu0 0.0
    %73 = vmatpush1.msra.mxu0 0.0
    %74 = vmatprep.subr.mxu0 0.0
    %75 = vmatpush1.msra.mxu0 0.0
    %76 = vmatprep.subr.mxu0 0.0
    %77 = vmatpush1.msra.mxu0 0.0
    %78 = vmatprep.subr.mxu0 0.0
    %79 = vmatpush1.msra.mxu0 0.0
    %80 = vmatprep.subr.mxu0 0.0
    %81 = vmatpush1.msra.mxu0 0.0
    %82 = vmatprep.subr.mxu0 0.0
    %83 = vmatpush1.msra.mxu0 0.0
    %84 = vmatprep.subr.mxu0 0.0
    %85 = vmatpush1.msra.mxu0 0.0
    %86 = vmatprep.subr.mxu0 0.0
    %87 = vmatpush1.msra.mxu0 0.0
    %88 = vmatprep.subr.mxu0 0.0
    %89 = vmatpush1.msra.mxu0 0.0
    %90 = vmatprep.subr.mxu0 0.0
    %91 = vmatpush1.msra.mxu0 0.0
    %92 = vmatprep.subr.mxu0 0.0
    %93 = vmatpush1.msra.mxu0 0.0
    %94 = vmatprep.subr.mxu0 0.0
    %95 = vmatpush1.msra.mxu0 %v52
    %96 = vmatprep.subr.mxu0 0.0
    %97 = vmatpush2.msra.mxu0 0.0
    %98 = vmatprep.subr.mxu0 0.0
    %99 = vmatpush2.msra.mxu0 0.0
    %100 = vmatprep.subr.mxu0 0.0
    %101 = vmatpush2.msra.mxu0 0.0
    %102 = vmatprep.subr.mxu0 0.0
    %103 = vmatpush2.msra.mxu0 0.0
    %104 = vmatprep.subr.mxu0 0.0
    %105 = vmatpush2.msra.mxu0 0.0
    %106 = vmatprep.subr.mxu0 0.0
    %107 = vmatpush2.msra.mxu0 0.0
    %108 = vmatprep.subr.mxu0 0.0
    %109 = vmatpush2.msra.mxu0 0.0
    %110 = vmatprep.subr.mxu0 0.0
    %111 = vmatpush2.msra.mxu0 0.0
    %112 = vmatprep.subr.mxu0 0.0
    %113 = vmatpush2.msra.mxu0 0.0
    %114 = vmatprep.subr.mxu0 0.0
    %115 = vmatpush2.msra.mxu0 0.0
    %116 = vmatprep.subr.mxu0 0.0
    %117 = vmatpush2.msra.mxu0 0.0
    %118 = vmatprep.subr.mxu0 0.0
    %119 = vmatpush2.msra.mxu0 0.0
    %120 = vmatprep.subr.mxu0 0.0
    %121 = vmatpush2.msra.mxu0 0.0
    %122 = vmatprep.subr.mxu0 0.0
    %123 = vmatpush2.msra.mxu0 0.0
    %124 = vmatprep.subr.mxu0 0.0
    %125 = vmatpush2.msra.mxu0 0.0
    %126 = vmatprep.subr.mxu0 0.0
    %127 = vmatpush2.msra.mxu0 0.0
    %128 = vmatprep.mubr.f32.mxu0 0.0
    %129 = vmatmul.mubr.f32.gmra.mxu0 %v62
    %v130 = vpop.f32.mrf.mxu0
    %v131 = vadd.f32 %v58, %v130
    %v132 = vpop.f32.mrf.mxu0
    %133 = vdwg.mxu0
    %v134 = vmax.f32 %v131, 0.0
    %v135 = vld [vmem:[%s3] sm:$0xff]
    %v136 = vld [vmem:[%s3 + $0x8] sm:$0xff]
    %v137 = vld [vmem:[%s3 + $0x10] sm:$0xff]
    %v138 = vld [vmem:[%s3 + $0x18] sm:$0xff]
    %v139 = vld [vmem:[%s3 + $0x20] sm:$0xff]
    %v140 = vld [vmem:[%s3 + $0x28] sm:$0xff]
    %v141 = vld [vmem:[%s3 + $0x30] sm:$0xff]
    %v142 = vld [vmem:[%s3 + $0x38] sm:$0xff]
    %v143 = vld [vmem:[%s3 + $0x40] sm:$0xff]
    %v144 = vld [vmem:[%s3 + $0x48] sm:$0xff]
    %v145 = vld [vmem:[%s3 + $0x50] sm:$0xff]
    %v146 = vld [vmem:[%s3 + $0x58] sm:$0xff]
    %v147 = vld [vmem:[%s3 + $0x60] sm:$0xff]
    %v148 = vld [vmem:[%s3 + $0x68] sm:$0xff]
    %v149 = vld [vmem:[%s3 + $0x70] sm:$0xff]
    %v150 = vld [vmem:[%s3 + $0x78] sm:$0xff]
    %v151 = vld [vmem:[#allocation5] sm:$0x1]
    %v153 = vlaneseq
    %v154 = vshrl.u32 %v153, 7
    %v155 = vsub.s32 0, %v154
    %v156 = vrot.slane %v151, %v155
    %158 = vmatprep.subr.mxu0 0.0
    %159 = vmatpush1.msra.mxu0 %v150
    %160 = vmatprep.subr.mxu0 0.0
    %161 = vmatpush1.msra.mxu0 %v149
    %162 = vmatprep.subr.mxu0 0.0
    %163 = vmatpush1.msra.mxu0 %v148
    %164 = vmatprep.subr.mxu0 0.0
    %165 = vmatpush1.msra.mxu0 %v147
    %166 = vmatprep.subr.mxu0 0.0
    %167 = vmatpush1.msra.mxu0 %v146
    %168 = vmatprep.subr.mxu0 0.0
    %169 = vmatpush1.msra.mxu0 %v145
    %170 = vmatprep.subr.mxu0 0.0
    %171 = vmatpush1.msra.mxu0 %v144
    %172 = vmatprep.subr.mxu0 0.0
    %173 = vmatpush1.msra.mxu0 %v143
    %174 = vmatprep.subr.mxu0 0.0
    %175 = vmatpush1.msra.mxu0 %v142
    %176 = vmatprep.subr.mxu0 0.0
    %177 = vmatpush1.msra.mxu0 %v141
    %178 = vmatprep.subr.mxu0 0.0
    %179 = vmatpush1.msra.mxu0 %v140
    %180 = vmatprep.subr.mxu0 0.0
    %181 = vmatpush1.msra.mxu0 %v139
    %182 = vmatprep.subr.mxu0 0.0
    %183 = vmatpush1.msra.mxu0 %v138
    %184 = vmatprep.subr.mxu0 0.0
    %185 = vmatpush1.msra.mxu0 %v137
    %186 = vmatprep.subr.mxu0 0.0
    %187 = vmatpush1.msra.mxu0 %v136
    %188 = vmatprep.subr.mxu0 0.0
    %189 = vmatpush1.msra.mxu0 %v135
    %190 = vmatprep.subr.mxu0 0.0
    %191 = vmatpush2.msra.mxu0 0.0
    %192 = vmatprep.subr.mxu0 0.0
    %193 = vmatpush2.msra.mxu0 0.0
    %194 = vmatprep.subr.mxu0 0.0
    %195 = vmatpush2.msra.mxu0 0.0
    %196 = vmatprep.subr.mxu0 0.0
    %197 = vmatpush2.msra.mxu0 0.0
    %198 = vmatprep.subr.mxu0 0.0
    %199 = vmatpush2.msra.mxu0 0.0
    %200 = vmatprep.subr.mxu0 0.0
    %201 = vmatpush2.msra.mxu0 0.0
    %202 = vmatprep.subr.mxu0 0.0
    %203 = vmatpush2.msra.mxu0 0.0
    %204 = vmatprep.subr.mxu0 0.0
    %205 = vmatpush2.msra.mxu0 0.0
    %206 = vmatprep.subr.mxu0 0.0
    %207 = vmatpush2.msra.mxu0 0.0
    %208 = vmatprep.subr.mxu0 0.0
    %209 = vmatpush2.msra.mxu0 0.0
    %210 = vmatprep.subr.mxu0 0.0
    %211 = vmatpush2.msra.mxu0 0.0
    %212 = vmatprep.subr.mxu0 0.0
    %213 = vmatpush2.msra.mxu0 0.0
    %214 = vmatprep.subr.mxu0 0.0
    %215 = vmatpush2.msra.mxu0 0.0
    %216 = vmatprep.subr.mxu0 0.0
    %217 = vmatpush2.msra.mxu0 0.0
    %218 = vmatprep.subr.mxu0 0.0
    %219 = vmatpush2.msra.mxu0 0.0
    %220 = vmatprep.subr.mxu0 0.0
    %221 = vmatpush2.msra.mxu0 0.0
    %222 = vmatprep.mubr.f32.mxu0 0.0
    %223 = vmatmul.mubr.f32.gmra.mxu0 %v134
    %v224 = vpop.f32.mrf.mxu0
    %v225 = vadd.f32 %v156, %v224
    %v226 = vpop.f32.mrf.mxu0
    %227 = vdwg.mxu0
    %v228 = vmax.f32 %v225, 0.0
    %v229 = vld [vmem:[%s5] sm:$0xff]
    %v230 = vld [vmem:[%s5 + $0x8] sm:$0xff]
    %v231 = vld [vmem:[%s5 + $0x10] sm:$0xff]
    %v232 = vld [vmem:[%s5 + $0x18] sm:$0xff]
    %v233 = vld [vmem:[%s5 + $0x20] sm:$0xff]
    %v234 = vld [vmem:[%s5 + $0x28] sm:$0xff]
    %v235 = vld [vmem:[%s5 + $0x30] sm:$0xff]
    %v236 = vld [vmem:[%s5 + $0x38] sm:$0xff]
    %v237 = vld [vmem:[%s5 + $0x40] sm:$0xff]
    %v238 = vld [vmem:[%s5 + $0x48] sm:$0xff]
    %v239 = vld [vmem:[%s5 + $0x50] sm:$0xff]
    %v240 = vld [vmem:[%s5 + $0x58] sm:$0xff]
    %v241 = vld [vmem:[%s5 + $0x60] sm:$0xff]
    %v242 = vld [vmem:[%s5 + $0x68] sm:$0xff]
    %v243 = vld [vmem:[%s5 + $0x70] sm:$0xff]
    %v244 = vld [vmem:[%s5 + $0x78] sm:$0xff]
    %v245 = vld [vmem:[%s6] sm:$0x1]
    %v247 = vlaneseq
    %v248 = vshrl.u32 %v247, 7
    %v249 = vsub.s32 0, %v248
    %v250 = vrot.slane %v245, %v249
    %252 = vmatprep.subr.mxu0 0.0
    %253 = vmatpush1.msra.mxu0 %v244
    %254 = vmatprep.subr.mxu0 0.0
    %255 = vmatpush1.msra.mxu0 %v243
    %256 = vmatprep.subr.mxu0 0.0
    %257 = vmatpush1.msra.mxu0 %v242
    %258 = vmatprep.subr.mxu0 0.0
    %259 = vmatpush1.msra.mxu0 %v241
    %260 = vmatprep.subr.mxu0 0.0
    %261 = vmatpush1.msra.mxu0 %v240
    %262 = vmatprep.subr.mxu0 0.0
    %263 = vmatpush1.msra.mxu0 %v239
    %264 = vmatprep.subr.mxu0 0.0
    %265 = vmatpush1.msra.mxu0 %v238
    %266 = vmatprep.subr.mxu0 0.0
    %267 = vmatpush1.msra.mxu0 %v237
    %268 = vmatprep.subr.mxu0 0.0
    %269 = vmatpush1.msra.mxu0 %v236
    %270 = vmatprep.subr.mxu0 0.0
    %271 = vmatpush1.msra.mxu0 %v235
    %272 = vmatprep.subr.mxu0 0.0
    %273 = vmatpush1.msra.mxu0 %v234
    %274 = vmatprep.subr.mxu0 0.0
    %275 = vmatpush1.msra.mxu0 %v233
    %276 = vmatprep.subr.mxu0 0.0
    %277 = vmatpush1.msra.mxu0 %v232
    %278 = vmatprep.subr.mxu0 0.0
    %279 = vmatpush1.msra.mxu0 %v231
    %280 = vmatprep.subr.mxu0 0.0
    %281 = vmatpush1.msra.mxu0 %v230
    %282 = vmatprep.subr.mxu0 0.0
    %283 = vmatpush1.msra.mxu0 %v229
    %284 = vmatprep.subr.mxu0 0.0
    %285 = vmatpush2.msra.mxu0 0.0
    %286 = vmatprep.subr.mxu0 0.0
    %287 = vmatpush2.msra.mxu0 0.0
    %288 = vmatprep.subr.mxu0 0.0
    %289 = vmatpush2.msra.mxu0 0.0
    %290 = vmatprep.subr.mxu0 0.0
    %291 = vmatpush2.msra.mxu0 0.0
    %292 = vmatprep.subr.mxu0 0.0
    %293 = vmatpush2.msra.mxu0 0.0
    %294 = vmatprep.subr.mxu0 0.0
    %295 = vmatpush2.msra.mxu0 0.0
    %296 = vmatprep.subr.mxu0 0.0
    %297 = vmatpush2.msra.mxu0 0.0
    %298 = vmatprep.subr.mxu0 0.0
    %299 = vmatpush2.msra.mxu0 0.0
    %300 = vmatprep.subr.mxu0 0.0
    %301 = vmatpush2.msra.mxu0 0.0
    %302 = vmatprep.subr.mxu0 0.0
    %303 = vmatpush2.msra.mxu0 0.0
    %304 = vmatprep.subr.mxu0 0.0
    %305 = vmatpush2.msra.mxu0 0.0
    %306 = vmatprep.subr.mxu0 0.0
    %307 = vmatpush2.msra.mxu0 0.0
    %308 = vmatprep.subr.mxu0 0.0
    %309 = vmatpush2.msra.mxu0 0.0
    %310 = vmatprep.subr.mxu0 0.0
    %311 = vmatpush2.msra.mxu0 0.0
    %312 = vmatprep.subr.mxu0 0.0
    %313 = vmatpush2.msra.mxu0 0.0
    %314 = vmatprep.subr.mxu0 0.0
    %315 = vmatpush2.msra.mxu0 0.0
    %316 = vmatprep.mubr.f32.mxu0 0.0
    %317 = vmatmul.mubr.f32.gmra.mxu0 %v228
    %v318 = vpop.f32.mrf.mxu0
    %v319 = vadd.f32 %v250, %v318
    %v320 = vpop.f32.mrf.mxu0
    %321 = vdwg.mxu0
    %322 = vst.msk [vmem:[#allocation7] sm:$0xff] %vm60, %v319
    // Predicated region
    $region38: #{tpu_custom_call.1} parent=1 // pred_check
      _
    $region39: #{tpu_custom_call.1} parent=1 // pred_check_branch
      %324 = sbr.rel (0) target = $region41
    $region40: #{tpu_custom_call.1} parent=1 // pred_region
      %s326 = ssub.s32 128, 128
      %327 = vsyncadd [#allocation4], %s326
      %s329 = sshll.u32 [#allocation7], 4
      %s330 = int_to_ptr.vmem [resolvable:$true] %s329
      %332 = dma.vmem_to_hbm [thread:$0]  %s330, 128, %s7, [#allocation4]
    $region41: #{tpu_custom_call.1} parent=1 // pred_fallthru
      _
    // Predicated region
    $region42: #{tpu_custom_call.1} parent=1 // pred_check
      _
    $region43: #{tpu_custom_call.1} parent=1 // pred_check_branch
      %334 = sbr.rel (0) target = $region45
    $region44: #{tpu_custom_call.1} parent=1 // pred_region
      %335 = dma.done [#allocation4], 128
    $region45: #{tpu_custom_call.1} parent=1 // pred_fallthru
      _
    %336 = vsyncpa [#allocation3], 1
    %337 = vsyncpa [#allocation6], 1
    %338 = vsyncpa [#allocation4], 1

</llo_original>
